<compile_context>
chip_gen: v5e
topology: v5e:2x2
jax: 0.10.0
libtpu: 0.0.40
codegen_flags: <defaults>
</compile_context>

<pallas_src>
import functools
import math

import jax
import jax.numpy as jnp
from jax.experimental import pallas as pl
from jax.experimental.pallas import tpu as pltpu

_VMEM = pl.BlockSpec(memory_space=pltpu.MemorySpace.VMEM)
_VMEM_BUDGET = 24 * 1024 * 1024   # headroom under the 32 MiB scoped limit
_VMEM_LIMIT = 32 * 1024 * 1024


def _round_up(x, m):
    return ((x + m - 1) // m) * m


def _pick_tile(dim, candidates):
    """Largest candidate tile that exactly divides dim, else the full dim."""
    for c in candidates:
        if c <= dim and dim % c == 0:
            return c
    return dim


def _tensorcores_per_chip():
    """Best-effort TensorCore count (2 on v7x megacore); safe fallback = 1."""
    try:
        info = pltpu.get_tpu_info()
        for attr in ("num_cores", "tensor_cores_per_chip", "num_tensorcores"):
            v = getattr(info, attr, None)
            if isinstance(v, int) and 0 < v <= 8:
                return v
    except Exception:
        pass
    try:
        if "v7" in jax.devices()[0].device_kind.lower():
            return 2
    except Exception:
        pass
    return 1


_NUM_TC = _tensorcores_per_chip()


# ----------------------------------------------------------------------------
# Pallas kernels
# ----------------------------------------------------------------------------
def _matmul_single_kernel(a_ref, b_ref, t_ref, *rest, relu):
    """Single-K-step matmul: o = [relu]( A @ B + shift [+ residual] )."""
    if len(rest) == 2:
        r_ref, o_ref = rest
    else:
        (o_ref,) = rest
        r_ref = None
    y = jnp.dot(a_ref[...], b_ref[...],
                preferred_element_type=jnp.float32) + t_ref[...]
    if r_ref is not None:
        y = y + r_ref[...].astype(jnp.float32)
    if relu:
        y = jnp.maximum(y, 0.0)
    o_ref[...] = y.astype(o_ref.dtype)


def _matmul_reduce_kernel(a_ref, b_ref, t_ref, *rest, relu):
    """K-gridded matmul fallback (VMEM accumulator, init/writeback via pl.when)."""
    if len(rest) == 3:
        r_ref, o_ref, acc_ref = rest
    else:
        o_ref, acc_ref = rest
        r_ref = None

    k = pl.program_id(2)
    nk = pl.num_programs(2)

    @pl.when(k == 0)
    def _():
        acc_ref[...] = jnp.zeros_like(acc_ref)

    acc_ref[...] += jnp.dot(a_ref[...], b_ref[...],
                            preferred_element_type=jnp.float32)

    @pl.when(k == nk - 1)
    def _():
        y = acc_ref[...] + t_ref[...]
        if r_ref is not None:
            y = y + r_ref[...].astype(jnp.float32)
        if relu:
            y = jnp.maximum(y, 0.0)
        o_ref[...] = y.astype(o_ref.dtype)


def _max_reduce_kernel(x_ref, o_ref):
    # x: (KH*KW, tr, L) bf16 -> o: (tr, L)   max over the pooling-window axis
    o_ref[...] = jnp.max(x_ref[...], axis=0)


def _gap_fc_kernel(x_ref, w_ref, b_ref, o_ref):
    # x: (N, H*W, C) bf16, w: (C, Npad) bf16, b: (1, Npad) f32 -> o: (N, Npad) f32
    pooled = jnp.mean(x_ref[...].astype(jnp.float32), axis=1).astype(jnp.bfloat16)
    o_ref[...] = jnp.dot(pooled, w_ref[...],
                         preferred_element_type=jnp.float32) + b_ref[...]


# ----------------------------------------------------------------------------
# Pallas wrappers
# ----------------------------------------------------------------------------
def _matmul_vmem_bytes(tm, tk, tn, has_residual):
    # double-buffered bf16 inputs + f32 accumulator + double-buffered bf16 out
    per_step_in = tm * tk * 2 + tk * tn * 2 + tn * 4
    if has_residual:
        per_step_in += tm * tn * 2
    return 2 * per_step_in + tm * tn * 4 + 2 * tm * tn * 2


def matmul_affine(a, b, shift, *, relu, residual=None, out_dtype=jnp.bfloat16):
    """y = [relu]( a @ b + shift [+ residual] ).  BN scale pre-folded into b.

    a: (M,K) bf16, b: (K,N) bf16, shift: (1,N) f32, residual: (M,N) bf16.
    """
    M, K = a.shape
    K2, N = b.shape
    assert K == K2
    has_res = residual is not None

    tm = _pick_tile(M, (512, 256, 128, 64, 32, 16, 8))
    # Lane-dense N tiles; on megacore (v7x) split N so the parallel extent >= 2.
    if _NUM_TC >= 2 and N >= 256 and (M // tm) < 2:
        tn = _pick_tile(N // 2, (256, 128))
    else:
        tn = _pick_tile(N, (512, 256, 128))

    # Collapse K to one grid step whenever the whole weight slab fits VMEM.
    if _matmul_vmem_bytes(tm, K, tn, has_res) <= _VMEM_BUDGET:
        tk = K
    else:
        tk = 128
        for c in (2304, 1152, 768, 512, 384, 256, 128):
            if c <= K and K % c == 0 and \
                    _matmul_vmem_bytes(tm, c, tn, has_res) <= _VMEM_BUDGET:
                tk = c
                break

    nk = K // tk
    if nk == 1:
        in_specs = [
            pl.BlockSpec((tm, K), lambda i, j: (i, 0)),
            pl.BlockSpec((K, tn), lambda i, j: (0, j)),
            pl.BlockSpec((1, tn), lambda i, j: (0, j)),
        ]
        args = [a, b, shift]
        if has_res:
            in_specs.append(pl.BlockSpec((tm, tn), lambda i, j: (i, j)))
            args.append(residual)
        return pl.pallas_call(
            functools.partial(_matmul_single_kernel, relu=relu),
            out_shape=jax.ShapeDtypeStruct((M, N), out_dtype),
            grid_spec=pltpu.PrefetchScalarGridSpec(
                num_scalar_prefetch=0,
                grid=(M // tm, N // tn),
                in_specs=in_specs,
                out_specs=pl.BlockSpec((tm, tn), lambda i, j: (i, j)),
            ),
            compiler_params=pltpu.CompilerParams(
                dimension_semantics=("parallel", "parallel"),
                vmem_limit_bytes=_VMEM_LIMIT,
            ),
        )(*args)

    # General fallback: K-gridded reduction with a VMEM f32 accumulator.
    in_specs = [
        pl.BlockSpec((tm, tk), lambda i, j, k: (i, k)),
        pl.BlockSpec((tk, tn), lambda i, j, k: (k, j)),
        pl.BlockSpec((1, tn), lambda i, j, k: (0, j)),
    ]
    args = [a, b, shift]
    if has_res:
        in_specs.append(pl.BlockSpec((tm, tn), lambda i, j, k: (i, j)))
        args.append(residual)
    return pl.pallas_call(
        functools.partial(_matmul_reduce_kernel, relu=relu),
        out_shape=jax.ShapeDtypeStruct((M, N), out_dtype),
        grid_spec=pltpu.PrefetchScalarGridSpec(
            num_scalar_prefetch=0,
            grid=(M // tm, N // tn, nk),
            in_specs=in_specs,
            out_specs=pl.BlockSpec((tm, tn), lambda i, j, k: (i, j)),
            scratch_shapes=[pltpu.VMEM((tm, tn), jnp.float32)],
        ),
        compiler_params=pltpu.CompilerParams(
            dimension_semantics=("parallel", "parallel", "arbitrary"),
            vmem_limit_bytes=_VMEM_LIMIT,
        ),
    )(*args)


def gap_fc(x_flat, fc_w, fc_b):
    """Fused global-average-pool + FC + bias. x_flat: (N, H*W, C) bf16."""
    N = x_flat.shape[0]
    npad = fc_w.shape[1]
    return pl.pallas_call(
        _gap_fc_kernel,
        out_shape=jax.ShapeDtypeStruct((N, npad), jnp.float32),
        in_specs=[_VMEM, _VMEM, _VMEM],
        out_specs=_VMEM,
    )(x_flat, fc_w, fc_b)


# ----------------------------------------------------------------------------
# JAX glue (layout / patch extraction only)
# ----------------------------------------------------------------------------
def im2col(x, kh, kw, stride, pad, kpad):
    """x: (N,H,W,C) -> ((N*OH*OW, kpad), OH, OW); K zero-padded to kpad."""
    if pad > 0:
        x = jnp.pad(x, ((0, 0), (pad, pad), (pad, pad), (0, 0)))
    N, H, W, C = x.shape
    OH = (H - kh) // stride + 1
    OW = (W - kw) // stride + 1
    cols = []
    for i in range(kh):
        for j in range(kw):
            cols.append(
                x[:, i: i + stride * (OH - 1) + 1: stride,
                     j: j + stride * (OW - 1) + 1: stride, :])
    patches = jnp.concatenate(cols, axis=-1).reshape(N * OH * OW, kh * kw * C)
    k = kh * kw * C
    if kpad > k:
        patches = jnp.pad(patches, ((0, 0), (0, kpad - k)))
    return patches, OH, OW


def conv_apply(x, conv, *, relu, residual=None):
    """Conv (no bias) + folded BN shift (+ optional fused residual / ReLU)."""
    N = x.shape[0]
    cout = conv["w"].shape[1]
    kpad = conv["w"].shape[0]
    if conv["kh"] == 1 and conv["kw"] == 1 and conv["pad"] == 0:
        # 1x1 conv: strided slice + reshape, no im2col materialization.
        s = conv["stride"]
        xs = x[:, ::s, ::s, :]
        _, OH, OW, C = xs.shape
        patches = xs.reshape(N * OH * OW, C)
        if kpad > C:
            patches = jnp.pad(patches, ((0, 0), (0, kpad - C)))
    else:
        patches, OH, OW = im2col(x, conv["kh"], conv["kw"], conv["stride"],
                                 conv["pad"], kpad)
    y = matmul_affine(patches, conv["w"], conv["shift"],
                      relu=relu, residual=residual)
    return y.reshape(N, OH, OW, cout)


def maxpool_3x3_s2_p1(x):
    N, H, W, C = x.shape
    xp = jnp.pad(x, ((0, 0), (1, 1), (1, 1), (0, 0)),
                 constant_values=-jnp.inf)
    OH = (H + 2 - 3) // 2 + 1
    OW = (W + 2 - 3) // 2 + 1
    wins = []
    for i in range(3):
        for j in range(3):
            wins.append(
                xp[:, i: i + 2 * (OH - 1) + 1: 2,
                      j: j + 2 * (OW - 1) + 1: 2, :].reshape(N * OH, OW * C))
    stacked = jnp.stack(wins, axis=0)          # (9, R, L) lane-dense trailing view
    R, L = N * OH, OW * C
    tr = _pick_tile(R, (256, 128, 64, 32, 16, 8))
    out = pl.pallas_call(
        _max_reduce_kernel,
        out_shape=jax.ShapeDtypeStruct((R, L), x.dtype),
        grid_spec=pltpu.PrefetchScalarGridSpec(
            num_scalar_prefetch=0,
            grid=(R // tr,),
            in_specs=[pl.BlockSpec((9, tr, L), lambda r: (0, r, 0))],
            out_specs=pl.BlockSpec((tr, L), lambda r: (r, 0)),
        ),
        compiler_params=pltpu.CompilerParams(
            dimension_semantics=("parallel",),
            vmem_limit_bytes=_VMEM_LIMIT,
        ),
    )(stacked)
    return out.reshape(N, OH, OW, C)


# ----------------------------------------------------------------------------
# Deterministic synthetic parameters (ResNet18 shapes, 4-ch stem, 5 classes)
# ----------------------------------------------------------------------------
def _fold_bn(gamma, beta, mean, var, eps=1e-5):
    scale = gamma / jnp.sqrt(var + eps)
    shift = beta - mean * scale
    return scale, shift


def _init_bn(key, c):
    k1, k2, k3, k4 = jax.random.split(key, 4)
    gamma = 1.0 + 0.05 * jax.random.normal(k1, (c,), jnp.float32)
    beta = 0.05 * jax.random.normal(k2, (c,), jnp.float32)
    mean = 0.05 * jax.random.normal(k3, (c,), jnp.float32)
    var = 1.0 + 0.1 * jnp.abs(jax.random.normal(k4, (c,), jnp.float32))
    scale, shift = _fold_bn(gamma, beta, mean, var)
    return scale.reshape(1, c), shift.reshape(1, c)


def _cpad(c):
    return _round_up(c, 128)


def _make_conv(key, kh, kw, cin, cout, stride, pad, *, cin_pad=None, cout_pad=None):
    """Conv weights with BN scale folded in; channels padded to lane multiples.

    Padded input channels have zero weights (so zero-padded activations are
    inert); padded output channels have zero weights AND zero shift (so they
    stay exactly zero through ReLU / residual adds).
    """
    cin_pad = cin if cin_pad is None else cin_pad
    cout_pad = cout if cout_pad is None else cout_pad
    wkey, bnkey = jax.random.split(key)
    fan_in = kh * kw * cin
    w = (jax.random.normal(wkey, (kh, kw, cin, cout), jnp.float32)
         * (1.0 / math.sqrt(fan_in)))
    scale, shift = _init_bn(bnkey, cout)
    w = w * scale.reshape(1, 1, 1, cout)                      # fold BN scale
    w = jnp.pad(w, ((0, 0), (0, 0), (0, cin_pad - cin), (0, cout_pad - cout)))
    shift = jnp.pad(shift, ((0, 0), (0, cout_pad - cout)))
    k = kh * kw * cin_pad
    kpad = _round_up(k, 128)
    wmat = jnp.pad(w.reshape(k, cout_pad), ((0, kpad - k), (0, 0)))
    return {"w": wmat.astype(jnp.bfloat16), "kh": kh, "kw": kw,
            "stride": stride, "pad": pad, "shift": shift.astype(jnp.float32)}


def build_params(key, num_classes=5):
    keys = iter(jax.random.split(key, 64))
    p = {
        "num_classes": num_classes,
        # RGBD stem: 4 input channels, 64 outputs padded to 128 lanes.
        "conv1": _make_conv(next(keys), 7, 7, 4, 64, stride=2, pad=3,
                            cout_pad=_cpad(64)),
    }
    stages = []
    cin = 64
    for cout, stride in [(64, 1), (128, 2), (256, 2), (512, 2)]:
        blocks = []
        for b in range(2):
            s = stride if b == 0 else 1
            c_in = cin if b == 0 else cout
            blk = {
                "conv1": _make_conv(next(keys), 3, 3, c_in, cout, s, 1,
                                    cin_pad=_cpad(c_in), cout_pad=_cpad(cout)),
                "conv2": _make_conv(next(keys), 3, 3, cout, cout, 1, 1,
                                    cin_pad=_cpad(cout), cout_pad=_cpad(cout)),
            }
            if s != 1 or c_in != cout:
                blk["ds"] = _make_conv(next(keys), 1, 1, c_in, cout, s, 0,
                                       cin_pad=_cpad(c_in), cout_pad=_cpad(cout))
            blocks.append(blk)
        stages.append(blocks)
        cin = cout
    p["stages"] = stages

    npad = _cpad(num_classes)
    k1, k2 = jax.random.split(next(keys))
    fc_w = 0.05 * jax.random.normal(k1, (512, num_classes), jnp.float32)
    fc_b = 0.05 * jax.random.normal(k2, (num_classes,), jnp.float32)
    p["fc_w"] = jnp.pad(fc_w, ((0, 0), (0, npad - num_classes))).astype(jnp.bfloat16)
    p["fc_b"] = jnp.pad(fc_b, (0, npad - num_classes)).reshape(1, npad).astype(jnp.float32)
    return p


# ----------------------------------------------------------------------------
# Forward pass
# ----------------------------------------------------------------------------
def basic_block(x, blk):
    out = conv_apply(x, blk["conv1"], relu=True)
    if "ds" in blk:
        identity = conv_apply(x, blk["ds"], relu=False)
    else:
        identity = x
    N, OH, OW, C = out.shape
    res = identity.reshape(N * OH * OW, C)
    # residual add + ReLU fused into conv2's matmul epilogue
    return conv_apply(out, blk["conv2"], relu=True, residual=res)


def resnet18_rgbd_forward(params, x_nchw):
    # NCHW (PyTorch) -> NHWC bf16 (kernel layout)
    x = jnp.transpose(x_nchw, (0, 2, 3, 1)).astype(jnp.bfloat16)
    x = conv_apply(x, params["conv1"], relu=True)          # 7x7/2, pad 3
    x = maxpool_3x3_s2_p1(x)
    for stage in params["stages"]:
        for blk in stage:
            x = basic_block(x, blk)
    N, H, W, C = x.shape
    logits_pad = gap_fc(x.reshape(N, H * W, C), params["fc_w"], params["fc_b"])
    return logits_pad[:, :params["num_classes"]]


if __name__ == "__main__":
    key = jax.random.PRNGKey(0)
    pkey, xkey = jax.random.split(key)
    params = build_params(pkey, num_classes=5)
    # Small input consistent with the module: batch=2, channels=4 (RGBD), 16x16
    x = jax.random.normal(xkey, (2, 4, 16, 16), jnp.float32)   # NCHW
    out = resnet18_rgbd_forward(params, x)
    out = jax.block_until_ready(out)
    assert out.shape == (2, 5), out.shape
    assert bool(jnp.all(jnp.isfinite(out)))
    print("KERNEL_OK")
</pallas_src>

<mosaic_0001>
module attributes {stable_mosaic.version = 11 : i64} {
  func.func @_matmul_single_kernel(%arg0: i32, %arg1: i32, %arg2: memref<128x256xbf16, #tpu.memory_space<vmem>>, %arg3: memref<256x128xbf16, #tpu.memory_space<vmem>>, %arg4: memref<1x128xf32, #tpu.memory_space<vmem>>, %arg5: memref<128x128xbf16, #tpu.memory_space<vmem>>) attributes {dimension_semantics = [#tpu.dimension_semantics<parallel>, #tpu.dimension_semantics<parallel>], iteration_bounds = array<i64: 1, 1>, scalar_prefetch = 0 : i64, scratch_operands = 0 : i64, tpu.core_type = #tpu.core_type<tc>, window_params = [{transform_indices = @transform_0, window_bounds = array<i64: 128, 256>}, {transform_indices = @transform_1, window_bounds = array<i64: 256, 128>}, {transform_indices = @transform_2, window_bounds = array<i64: 1, 128>}, {transform_indices = @transform_3, window_bounds = array<i64: 128, 128>}]} {
    %c0 = arith.constant 0 : index
    %c0_0 = arith.constant 0 : index
    %0 = vector.load %arg2[%c0, %c0_0] : memref<128x256xbf16, #tpu.memory_space<vmem>>, vector<128x256xbf16>
    %c0_1 = arith.constant 0 : index
    %c0_2 = arith.constant 0 : index
    %1 = vector.load %arg3[%c0_1, %c0_2] : memref<256x128xbf16, #tpu.memory_space<vmem>>, vector<256x128xbf16>
    %cst = arith.constant dense<0.000000e+00> : vector<128x128xf32>
    %2 = tpu.matmul %0, %1, %cst {dimension_numbers = #tpu.dot_dimension_numbers<[1], [0], [0], [1], [0, 0, 1, 1], [], []>} : vector<128x256xbf16>, vector<256x128xbf16>, vector<128x128xf32> -> vector<128x128xf32>
    %c0_3 = arith.constant 0 : index
    %c0_4 = arith.constant 0 : index
    %3 = vector.load %arg4[%c0_3, %c0_4] : memref<1x128xf32, #tpu.memory_space<vmem>>, vector<1x128xf32>
    %4 = vector.broadcast %3 : vector<1x128xf32> to vector<128x128xf32>
    %5 = arith.addf %2, %4 : vector<128x128xf32>
    %cst_5 = arith.constant 0.000000e+00 : f32
    %6 = vector.broadcast %cst_5 : f32 to vector<128x128xf32>
    %7 = arith.maximumf %5, %6 : vector<128x128xf32>
    %8 = arith.truncf %7 : vector<128x128xf32> to vector<128x128xbf16>
    %c0_6 = arith.constant 0 : index
    %c0_7 = arith.constant 0 : index
    %9 = vector.load %arg5[%c0_6, %c0_7] : memref<128x128xbf16, #tpu.memory_space<vmem>>, vector<128x128xbf16>
    tpu.vector_store %arg5[%c0_6, %c0_7], %8 {strides = array<i32>} : memref<128x128xbf16, #tpu.memory_space<vmem>>, vector<128x128xbf16>,
    return
  }
  func.func @transform_0(%arg0: i32, %arg1: i32) -> (i32, i32) {
    %c0_i32 = arith.constant 0 : i32
    %c0_i32_0 = arith.constant 0 : i32
    return %arg0, %c0_i32 : i32, i32
  }
  func.func @transform_1(%arg0: i32, %arg1: i32) -> (i32, i32) {
    %c0_i32 = arith.constant 0 : i32
    %c0_i32_0 = arith.constant 0 : i32
    return %c0_i32, %arg1 : i32, i32
  }
  func.func @transform_2(%arg0: i32, %arg1: i32) -> (i32, i32) {
    %c0_i32 = arith.constant 0 : i32
    %c0_i32_0 = arith.constant 0 : i32
    return %c0_i32, %arg1 : i32, i32
  }
  func.func @transform_3(%arg0: i32, %arg1: i32) -> (i32, i32) {
    %c0_i32 = arith.constant 0 : i32
    return %arg0, %arg1 : i32, i32
  }
}

</mosaic_0001>

<llo_original>
// kernel: tpu_custom_call.1
$region0: #{tpu_custom_call.1}
  #allocation0 [shape = 'u32[]', space=smem, size = 0x4, offset = 0x4, fixed_abs, tag = 'smem constant byte address 0x4 - core index']
  #allocation1 [shape = 'u32[72,128]{1,0:T(1,128)}', space=vmem, size = 0x9000, scoped, tag = 'internal scratch']
  %s0 = inlined_call_operand.hbm [shape: bf16[128,256], index: 0, kind: input, shape index: {}]
  %s1 = inlined_call_operand.hbm [shape: bf16[256,128], index: 1, kind: input, shape index: {}]
  %s2 = inlined_call_operand.vmem [shape: f32[1,128], index: 2, kind: input, shape index: {}]
  %s3 = inlined_call_operand.hbm [shape: bf16[128,128], index: 3, kind: output, shape index: {}]
  %s4 = sld [smem:[#allocation0]]
  $region30: #{tpu_custom_call.1} parent=0
    _
  %s6 = ssub.s32 1, %s4
  %s7 = scalar_select 0, %s6, %s4
  $region1: #{tpu_custom_call.1} parent=0
    #allocation2 [shape = 'u8[65536]{0}', space=vmem, size = 0x10000, scoped, tag = 'input window, operand 0, single buffered']
    #allocation3 [shape = 's32[1]{0}', space=sflag, size = 0x4, scoped, tag = 'scoped memory for tpu_custom_call.1']
    #allocation4 [shape = 's32[1]{0}', space=sflag, size = 0x4, scoped, tag = 'scoped memory for tpu_custom_call.1']
    #allocation5 [shape = 'u8[65536]{0}', space=vmem, size = 0x10000, scoped, tag = 'input window, operand 1, single buffered']
    #allocation6 [shape = 's32[1]{0}', space=sflag, size = 0x4, scoped, tag = 'scoped memory for tpu_custom_call.1']
    #allocation7 [shape = 'u8[32768]{0}', space=vmem, size = 0x8000, scoped, tag = 'output window, operand 0, single buffered']
    %8 = vsyncpa [#allocation3], 0
    %9 = vsyncpa [#allocation6], 0
    %10 = vsyncpa [#allocation4], 0
    // Predicated region
    $region2: #{tpu_custom_call.1} parent=1 // pred_check
      _
    $region3: #{tpu_custom_call.1} parent=1 // pred_check_branch
      %12 = sbr.rel (0) target = $region5
    $region4: #{tpu_custom_call.1} parent=1 // pred_region
      %14 = vsyncadd [#allocation3], 0
      %s15 = sshll.u32 %s0, 4
      %s16 = int_to_ptr.hbm [resolvable:$true] %s15
      %s17 = sshll.u32 [#allocation2], 4
      %s18 = int_to_ptr.vmem [resolvable:$true] %s17
      %23 = dma.hbm_to_vmem [thread:$0]  %s16, 2048, %s18, [#allocation3], 128, 128, 8
    $region5: #{tpu_custom_call.1} parent=1 // pred_fallthru
      _
    // Predicated region
    $region6: #{tpu_custom_call.1} parent=1 // pred_check
      _
    $region7: #{tpu_custom_call.1} parent=1 // pred_check_branch
      %25 = sbr.rel (0) target = $region9
    $region8: #{tpu_custom_call.1} parent=1 // pred_region
      %27 = vsyncadd [#allocation6], 0
      %s28 = sshll.u32 %s1, 4
      %s29 = int_to_ptr.hbm [resolvable:$true] %s28
      %s30 = sshll.u32 [#allocation5], 4
      %s31 = int_to_ptr.vmem [resolvable:$true] %s30
      %36 = dma.hbm_to_vmem [thread:$0]  %s29, 2048, %s31, [#allocation6], 64, 64, 4
    $region9: #{tpu_custom_call.1} parent=1 // pred_fallthru
      _
    // Predicated region
    $region10: #{tpu_custom_call.1} parent=1 // pred_check
      _
    $region11: #{tpu_custom_call.1} parent=1 // pred_check_branch
      %38 = sbr.rel (0) target = $region13
    $region12: #{tpu_custom_call.1} parent=1 // pred_region
      _
    $region13: #{tpu_custom_call.1} parent=1 // pred_fallthru
      _
    // Predicated region
    $region14: #{tpu_custom_call.1} parent=1 // pred_check
      _
    $region15: #{tpu_custom_call.1} parent=1 // pred_check_branch
      %40 = sbr.rel (0) target = $region17
    $region16: #{tpu_custom_call.1} parent=1 // pred_region
      %42 = dma.done [#allocation3], 2048
    $region17: #{tpu_custom_call.1} parent=1 // pred_fallthru
      _
    // Predicated region
    $region18: #{tpu_custom_call.1} parent=1 // pred_check
      _
    $region19: #{tpu_custom_call.1} parent=1 // pred_check_branch
      %44 = sbr.rel (0) target = $region21
    $region20: #{tpu_custom_call.1} parent=1 // pred_region
      %46 = dma.done [#allocation6], 2048
    $region21: #{tpu_custom_call.1} parent=1 // pred_fallthru
      _
    %v47 = vld [vmem:[#allocation2] sm:$0xff]
    %v48 = vld [vmem:[#allocation2 + $0x8] sm:$0xff]
    %v49 = vld [vmem:[#allocation2 + $0x10] sm:$0xff]
    %v50 = vld [vmem:[#allocation2 + $0x18] sm:$0xff]
    %v51 = vld [vmem:[#allocation2 + $0x20] sm:$0xff]
    %v52 = vld [vmem:[#allocation2 + $0x28] sm:$0xff]
    %v53 = vld [vmem:[#allocation2 + $0x30] sm:$0xff]
    %v54 = vld [vmem:[#allocation2 + $0x38] sm:$0xff]
    %v55 = vld [vmem:[#allocation2 + $0x40] sm:$0xff]
    %v56 = vld [vmem:[#allocation2 + $0x48] sm:$0xff]
    %v57 = vld [vmem:[#allocation2 + $0x50] sm:$0xff]
    %v58 = vld [vmem:[#allocation2 + $0x58] sm:$0xff]
    %v59 = vld [vmem:[#allocation2 + $0x60] sm:$0xff]
    %v60 = vld [vmem:[#allocation2 + $0x68] sm:$0xff]
    %v61 = vld [vmem:[#allocation2 + $0x70] sm:$0xff]
    %v62 = vld [vmem:[#allocation2 + $0x78] sm:$0xff]
    %v63 = vld [vmem:[#allocation5] sm:$0xf]
    %v64 = vld [vmem:[#allocation5 + $0x4] sm:$0xf]
    %v65 = vld [vmem:[#allocation5 + $0x8] sm:$0xf]
    %v66 = vld [vmem:[#allocation5 + $0xc] sm:$0xf]
    %v67 = vld [vmem:[#allocation5 + $0x10] sm:$0xf]
    %v68 = vld [vmem:[#allocation5 + $0x14] sm:$0xf]
    %v69 = vld [vmem:[#allocation5 + $0x18] sm:$0xf]
    %v70 = vld [vmem:[#allocation5 + $0x1c] sm:$0xf]
    %v71 = vld [vmem:[#allocation5 + $0x20] sm:$0xf]
    %v72 = vld [vmem:[#allocation5 + $0x24] sm:$0xf]
    %v73 = vld [vmem:[#allocation5 + $0x28] sm:$0xf]
    %v74 = vld [vmem:[#allocation5 + $0x2c] sm:$0xf]
    %v75 = vld [vmem:[#allocation5 + $0x30] sm:$0xf]
    %v76 = vld [vmem:[#allocation5 + $0x34] sm:$0xf]
    %v77 = vld [vmem:[#allocation5 + $0x38] sm:$0xf]
    %v78 = vld [vmem:[#allocation5 + $0x3c] sm:$0xf]
    %v79 = vld [vmem:[#allocation5 + $0x40] sm:$0xf]
    %v80 = vld [vmem:[#allocation5 + $0x44] sm:$0xf]
    %v81 = vld [vmem:[#allocation5 + $0x48] sm:$0xf]
    %v82 = vld [vmem:[#allocation5 + $0x4c] sm:$0xf]
    %v83 = vld [vmem:[#allocation5 + $0x50] sm:$0xf]
    %v84 = vld [vmem:[#allocation5 + $0x54] sm:$0xf]
    %v85 = vld [vmem:[#allocation5 + $0x58] sm:$0xf]
    %v86 = vld [vmem:[#allocation5 + $0x5c] sm:$0xf]
    %v87 = vld [vmem:[#allocation5 + $0x60] sm:$0xf]
    %v88 = vld [vmem:[#allocation5 + $0x64] sm:$0xf]
    %v89 = vld [vmem:[#allocation5 + $0x68] sm:$0xf]
    %v90 = vld [vmem:[#allocation5 + $0x6c] sm:$0xf]
    %v91 = vld [vmem:[#allocation5 + $0x70] sm:$0xf]
    %v92 = vld [vmem:[#allocation5 + $0x74] sm:$0xf]
    %v93 = vld [vmem:[#allocation5 + $0x78] sm:$0xf]
    %v94 = vld [vmem:[#allocation5 + $0x7c] sm:$0xf]
    %v95 = vld [vmem:[%s2] sm:$0x1]
    %v97 = vperm.slane %v95, 0
    %v115 = vunpack.c.l.b16 %v47
    %v116 = vunpack.c.h.b16 %v47
    %v117 = vunpack.c.l.b16 %v48
    %v118 = vunpack.c.h.b16 %v48
    %v119 = vunpack.c.l.b16 %v49
    %v120 = vunpack.c.h.b16 %v49
    %v121 = vunpack.c.l.b16 %v50
    %v122 = vunpack.c.h.b16 %v50
    %v123 = vunpack.c.l.b16 %v51
    %v124 = vunpack.c.h.b16 %v51
    %v125 = vunpack.c.l.b16 %v52
    %v126 = vunpack.c.h.b16 %v52
    %v127 = vunpack.c.l.b16 %v53
    %v128 = vunpack.c.h.b16 %v53
    %v129 = vunpack.c.l.b16 %v54
    %v130 = vunpack.c.h.b16 %v54
    %v131 = vunpack.c.l.b16 %v55
    %v132 = vunpack.c.h.b16 %v55
    %v133 = vunpack.c.l.b16 %v56
    %v134 = vunpack.c.h.b16 %v56
    %v135 = vunpack.c.l.b16 %v57
    %v136 = vunpack.c.h.b16 %v57
    %v137 = vunpack.c.l.b16 %v58
    %v138 = vunpack.c.h.b16 %v58
    %v139 = vunpack.c.l.b16 %v59
    %v140 = vunpack.c.h.b16 %v59
    %v141 = vunpack.c.l.b16 %v60
    %v142 = vunpack.c.h.b16 %v60
    %v143 = vunpack.c.l.b16 %v61
    %v144 = vunpack.c.h.b16 %v61
    %v145 = vunpack.c.l.b16 %v62
    %v146 = vunpack.c.h.b16 %v62
    %v147 = vpack.c.b16 %v117, %v115
    %v148 = vpack.c.b16 %v118, %v116
    %v149 = vpack.c.b16 %v121, %v119
    %v150 = vpack.c.b16 %v122, %v120
    %v151 = vpack.c.b16 %v125, %v123
    %v152 = vpack.c.b16 %v126, %v124
    %v153 = vpack.c.b16 %v129, %v127
    %v154 = vpack.c.b16 %v130, %v128
    %v155 = vpack.c.b16 %v133, %v131
    %v156 = vpack.c.b16 %v134, %v132
    %v157 = vpack.c.b16 %v137, %v135
    %v158 = vpack.c.b16 %v138, %v136
    %v159 = vpack.c.b16 %v141, %v139
    %v160 = vpack.c.b16 %v142, %v140
    %v161 = vpack.c.b16 %v145, %v143
    %v162 = vpack.c.b16 %v146, %v144
    %v211 = vunpack.c.l.b16 %v63
    %v212 = vunpack.c.l.b16 %v64
    %v213 = vunpack.c.l.b16 %v65
    %v214 = vunpack.c.l.b16 %v66
    %v215 = vunpack.c.l.b16 %v67
    %v216 = vunpack.c.l.b16 %v68
    %v217 = vunpack.c.l.b16 %v69
    %v218 = vunpack.c.l.b16 %v70
    %v219 = vunpack.c.l.b16 %v71
    %v220 = vunpack.c.l.b16 %v72
    %v221 = vunpack.c.l.b16 %v73
    %v222 = vunpack.c.l.b16 %v74
    %v223 = vunpack.c.l.b16 %v75
    %v224 = vunpack.c.l.b16 %v76
    %v225 = vunpack.c.l.b16 %v77
    %v226 = vunpack.c.l.b16 %v78
    %v227 = vunpack.c.l.b16 %v79
    %v228 = vunpack.c.l.b16 %v80
    %v229 = vunpack.c.l.b16 %v81
    %v230 = vunpack.c.l.b16 %v82
    %v231 = vunpack.c.l.b16 %v83
    %v232 = vunpack.c.l.b16 %v84
    %v233 = vunpack.c.l.b16 %v85
    %v234 = vunpack.c.l.b16 %v86
    %v235 = vunpack.c.l.b16 %v87
    %v236 = vunpack.c.l.b16 %v88
    %v237 = vunpack.c.l.b16 %v89
    %v238 = vunpack.c.l.b16 %v90
    %v239 = vunpack.c.l.b16 %v91
    %v240 = vunpack.c.l.b16 %v92
    %v241 = vunpack.c.l.b16 %v93
    %v242 = vunpack.c.l.b16 %v94
    %v243 = vpack.c.b16 %v212, %v211
    %v244 = vpack.c.b16 %v214, %v213
    %v245 = vpack.c.b16 %v216, %v215
    %v246 = vpack.c.b16 %v218, %v217
    %v247 = vpack.c.b16 %v220, %v219
    %v248 = vpack.c.b16 %v222, %v221
    %v249 = vpack.c.b16 %v224, %v223
    %v250 = vpack.c.b16 %v226, %v225
    %v251 = vpack.c.b16 %v228, %v227
    %v252 = vpack.c.b16 %v230, %v229
    %v253 = vpack.c.b16 %v232, %v231
    %v254 = vpack.c.b16 %v234, %v233
    %v255 = vpack.c.b16 %v236, %v235
    %v256 = vpack.c.b16 %v238, %v237
    %v257 = vpack.c.b16 %v240, %v239
    %v258 = vpack.c.b16 %v242, %v241
    %275 = vmatpush.bf16.msra.mxu0 %v250
    %276 = vmatpush.bf16.msra.mxu0 %v249
    %277 = vmatpush.bf16.msra.mxu0 %v248
    %278 = vmatpush.bf16.msra.mxu0 %v247
    %279 = vmatpush.bf16.msra.mxu0 %v246
    %280 = vmatpush.bf16.msra.mxu0 %v245
    %281 = vmatpush.bf16.msra.mxu0 %v244
    %282 = vmatpush.bf16.msra.mxu0 %v243
    %283 = vmatmul.bf16.gmra.mxu0 %v147
    %v284 = vpop.f32.mrf.mxu0
    %v285 = vadd.f32 %v97, %v284
    %v286 = vpop.f32.mrf.mxu0
    %v287 = vadd.f32 %v97, %v286
    %288 = vmatmul.bf16.gmra.mxu0 %v149
    %v289 = vpop.f32.mrf.mxu0
    %v290 = vadd.f32 %v97, %v289
    %v291 = vpop.f32.mrf.mxu0
    %v292 = vadd.f32 %v97, %v291
    %293 = vmatmul.bf16.gmra.mxu0 %v151
    %v294 = vpop.f32.mrf.mxu0
    %v295 = vadd.f32 %v97, %v294
    %v296 = vpop.f32.mrf.mxu0
    %v297 = vadd.f32 %v97, %v296
    %298 = vmatmul.bf16.gmra.mxu0 %v153
    %v299 = vpop.f32.mrf.mxu0
    %v300 = vadd.f32 %v97, %v299
    %v301 = vpop.f32.mrf.mxu0
    %v302 = vadd.f32 %v97, %v301
    %303 = vmatmul.bf16.gmra.mxu0 %v155
    %v304 = vpop.f32.mrf.mxu0
    %v305 = vadd.f32 %v97, %v304
    %v306 = vpop.f32.mrf.mxu0
    %v307 = vadd.f32 %v97, %v306
    %308 = vmatmul.bf16.gmra.mxu0 %v157
    %v309 = vpop.f32.mrf.mxu0
    %v310 = vadd.f32 %v97, %v309
    %v311 = vpop.f32.mrf.mxu0
    %v312 = vadd.f32 %v97, %v311
    %313 = vmatmul.bf16.gmra.mxu0 %v159
    %v314 = vpop.f32.mrf.mxu0
    %v315 = vadd.f32 %v97, %v314
    %v316 = vpop.f32.mrf.mxu0
    %v317 = vadd.f32 %v97, %v316
    %318 = vmatmul.bf16.gmra.mxu0 %v161
    %v319 = vpop.f32.mrf.mxu0
    %v320 = vadd.f32 %v97, %v319
    %v321 = vpop.f32.mrf.mxu0
    %v322 = vadd.f32 %v97, %v321
    %323 = vdwg.mxu0
    %324 = vmatpush.bf16.msra.mxu0 %v258
    %325 = vmatpush.bf16.msra.mxu0 %v257
    %326 = vmatpush.bf16.msra.mxu0 %v256
    %327 = vmatpush.bf16.msra.mxu0 %v255
    %328 = vmatpush.bf16.msra.mxu0 %v254
    %329 = vmatpush.bf16.msra.mxu0 %v253
    %330 = vmatpush.bf16.msra.mxu0 %v252
    %331 = vmatpush.bf16.msra.mxu0 %v251
    %332 = vmatmul.bf16.gmra.mxu0 %v148
    %v333 = vpop.f32.mrf.mxu0
    %v334 = vadd.f32 %v285, %v333
    %v335 = vpop.f32.mrf.mxu0
    %v336 = vadd.f32 %v287, %v335
    %337 = vmatmul.bf16.gmra.mxu0 %v150
    %v338 = vpop.f32.mrf.mxu0
    %v339 = vadd.f32 %v290, %v338
    %v340 = vpop.f32.mrf.mxu0
    %v341 = vadd.f32 %v292, %v340
    %342 = vmatmul.bf16.gmra.mxu0 %v152
    %v343 = vpop.f32.mrf.mxu0
    %v344 = vadd.f32 %v295, %v343
    %v345 = vpop.f32.mrf.mxu0
    %v346 = vadd.f32 %v297, %v345
    %347 = vmatmul.bf16.gmra.mxu0 %v154
    %v348 = vpop.f32.mrf.mxu0
    %v349 = vadd.f32 %v300, %v348
    %v350 = vpop.f32.mrf.mxu0
    %v351 = vadd.f32 %v302, %v350
    %352 = vmatmul.bf16.gmra.mxu0 %v156
    %v353 = vpop.f32.mrf.mxu0
    %v354 = vadd.f32 %v305, %v353
    %v355 = vpop.f32.mrf.mxu0
    %v356 = vadd.f32 %v307, %v355
    %357 = vmatmul.bf16.gmra.mxu0 %v158
    %v358 = vpop.f32.mrf.mxu0
    %v359 = vadd.f32 %v310, %v358
    %v360 = vpop.f32.mrf.mxu0
    %v361 = vadd.f32 %v312, %v360
    %362 = vmatmul.bf16.gmra.mxu0 %v160
    %v363 = vpop.f32.mrf.mxu0
    %v364 = vadd.f32 %v315, %v363
    %v365 = vpop.f32.mrf.mxu0
    %v366 = vadd.f32 %v317, %v365
    %367 = vmatmul.bf16.gmra.mxu0 %v162
    %v368 = vpop.f32.mrf.mxu0
    %v369 = vadd.f32 %v320, %v368
    %v370 = vpop.f32.mrf.mxu0
    %v371 = vadd.f32 %v322, %v370
    %372 = vdwg.mxu0
    %v373 = vmax.f32 %v334, 0.0
    %v374 = vmax.f32 %v336, 0.0
    %v375 = vmax.f32 %v339, 0.0
    %v376 = vmax.f32 %v341, 0.0
    %v377 = vmax.f32 %v344, 0.0
    %v378 = vmax.f32 %v346, 0.0
    %v379 = vmax.f32 %v349, 0.0
    %v380 = vmax.f32 %v351, 0.0
    %v381 = vmax.f32 %v354, 0.0
    %v382 = vmax.f32 %v356, 0.0
    %v383 = vmax.f32 %v359, 0.0
    %v384 = vmax.f32 %v361, 0.0
    %v385 = vmax.f32 %v364, 0.0
    %v386 = vmax.f32 %v366, 0.0
    %v387 = vmax.f32 %v369, 0.0
    %v388 = vmax.f32 %v371, 0.0
    %v389 = vpack.c.bf16 %v373, %v373
    %v390 = vpack.c.bf16 %v374, %v374
    %v391 = vpack.c.bf16 %v375, %v375
    %v392 = vpack.c.bf16 %v376, %v376
    %v393 = vpack.c.bf16 %v377, %v377
    %v394 = vpack.c.bf16 %v378, %v378
    %v395 = vpack.c.bf16 %v379, %v379
    %v396 = vpack.c.bf16 %v380, %v380
    %v397 = vpack.c.bf16 %v381, %v381
    %v398 = vpack.c.bf16 %v382, %v382
    %v399 = vpack.c.bf16 %v383, %v383
    %v400 = vpack.c.bf16 %v384, %v384
    %v401 = vpack.c.bf16 %v385, %v385
    %v402 = vpack.c.bf16 %v386, %v386
    %v403 = vpack.c.bf16 %v387, %v387
    %v404 = vpack.c.bf16 %v388, %v388
    %405 = vst [vmem:[#allocation7] sm:$0xf] %v389
    %406 = vst [vmem:[#allocation7 + $0x4] sm:$0xf] %v390
    %407 = vst [vmem:[#allocation7 + $0x8] sm:$0xf] %v391
    %408 = vst [vmem:[#allocation7 + $0xc] sm:$0xf] %v392
    %409 = vst [vmem:[#allocation7 + $0x10] sm:$0xf] %v393
    %410 = vst [vmem:[#allocation7 + $0x14] sm:$0xf] %v394
    %411 = vst [vmem:[#allocation7 + $0x18] sm:$0xf] %v395
    %412 = vst [vmem:[#allocation7 + $0x1c] sm:$0xf] %v396
    %413 = vst [vmem:[#allocation7 + $0x20] sm:$0xf] %v397
    %414 = vst [vmem:[#allocation7 + $0x24] sm:$0xf] %v398
    %415 = vst [vmem:[#allocation7 + $0x28] sm:$0xf] %v399
    %416 = vst [vmem:[#allocation7 + $0x2c] sm:$0xf] %v400
    %417 = vst [vmem:[#allocation7 + $0x30] sm:$0xf] %v401
    %418 = vst [vmem:[#allocation7 + $0x34] sm:$0xf] %v402
    %419 = vst [vmem:[#allocation7 + $0x38] sm:$0xf] %v403
    %420 = vst [vmem:[#allocation7 + $0x3c] sm:$0xf] %v404
    // Predicated region
    $region22: #{tpu_custom_call.1} parent=1 // pred_check
      _
    $region23: #{tpu_custom_call.1} parent=1 // pred_check_branch
      %422 = sbr.rel (0) target = $region25
    $region24: #{tpu_custom_call.1} parent=1 // pred_region
      %424 = vsyncadd [#allocation4], 0
      %s425 = sshll.u32 [#allocation7], 4
      %s426 = int_to_ptr.vmem [resolvable:$true] %s425
      %s427 = sshll.u32 %s3, 4
      %s428 = int_to_ptr.hbm [resolvable:$true] %s427
      %433 = dma.vmem_to_hbm [thread:$0]  %s426, 1024, %s428, [#allocation4], 64, 64, 4
    $region25: #{tpu_custom_call.1} parent=1 // pred_fallthru
      _
    // Predicated region
    $region26: #{tpu_custom_call.1} parent=1 // pred_check
      _
    $region27: #{tpu_custom_call.1} parent=1 // pred_check_branch
      %435 = sbr.rel (0) target = $region29
    $region28: #{tpu_custom_call.1} parent=1 // pred_region
      %437 = dma.done [#allocation4], 1024
    $region29: #{tpu_custom_call.1} parent=1 // pred_fallthru
      _
    %438 = vsyncpa [#allocation3], 1
    %439 = vsyncpa [#allocation6], 1
    %440 = vsyncpa [#allocation4], 1

</llo_original>
